<compile_context>
chip_gen: v6e
topology: v6e:2x2x1
jax: 0.10.0
libtpu: 0.0.40
codegen_flags: <defaults>
</compile_context>

<pallas_src>
import functools

import jax
import jax.numpy as jnp
from jax.experimental import pallas as pl
from jax.experimental.pallas import tpu as pltpu

LANE = 128            # lanes per vreg (ray index, fast axis)
SUBLANE = 8           # sublanes per vreg
NUM_SPLITS = 2        # leading 'parallel' grid axis -> both TensorCores on v7x
MAX_BLOCK_ROWS = 256  # rows of 128 rays per grid step (32768 rays / block)


def _round_up(x, m):
    return (x + m - 1) // m * m


def _choose_blocking(n):
    """For n rays pick (padded row count, rows per block)."""
    m = _round_up(n, LANE) // LANE                       # rows of 128 rays
    r = min(MAX_BLOCK_ROWS, _round_up(m, SUBLANE))       # multiple of 8
    m_pad = _round_up(m, r * NUM_SPLITS)                 # even split per core
    return m_pad, r


def _to_blocked(x, n_pad):
    """(3, N) -> (3, n_pad // 128, 128), zero padded along the ray axis."""
    n = x.shape[1]
    if n_pad != n:
        x = jnp.pad(x, ((0, 0), (0, n_pad - n)))
    return x.reshape(3, n_pad // LANE, LANE)


# ----------------------------------------------------------------------------
# Fused kernel: ray generation + L1 partial sums
#   kinv : (3, 3)  inverse intrinsics           (SMEM, scalar reads)
#   c2w  : (3, 4)  camera-to-world [R | t]      (SMEM, scalar reads)
#   pix  : (3, R, 128) block of [x, y, 1] pixel coords
#   gt   : (3, R, 128) block of ground-truth colors (zero padded)
#   pred : (3, R, 128) block of rendered colors (zero padded)
#   v    : (3, R, 128) block of world-space ray directions
#   acc  : (1, 8, 128) per-core L1 partial-sum slab (resident over the grid)
# ----------------------------------------------------------------------------
def _fused_kernel(kinv_ref, c2w_ref, pix_ref, gt_ref, pred_ref, v_ref, acc_ref):
    # loss accumulator: init at the first step of this core's slab
    @pl.when(pl.program_id(1) == 0)
    def _():
        acc_ref[...] = jnp.zeros_like(acc_ref)

    # ---- ray directions --------------------------------------------------
    px = pix_ref[0]                     # (R, 128) full-sublane lane-dense slabs
    py = pix_ref[1]
    pz = pix_ref[2]

    # camera-space direction d = K^-1 @ p  (scalars from SMEM)
    d0 = kinv_ref[0, 0] * px + kinv_ref[0, 1] * py + kinv_ref[0, 2] * pz
    d1 = kinv_ref[1, 0] * px + kinv_ref[1, 1] * py + kinv_ref[1, 2] * pz
    d2 = kinv_ref[2, 0] * px + kinv_ref[2, 1] * py + kinv_ref[2, 2] * pz

    # normalize with one EUP rsqrt (epsilon guards zero-padded rays)
    inv_norm = jax.lax.rsqrt(jnp.maximum(d0 * d0 + d1 * d1 + d2 * d2, 1e-20))
    n0 = d0 * inv_norm
    n1 = d1 * inv_norm
    n2 = d2 * inv_norm

    # world-space direction v = R_c2w @ n, stored row-by-row (no concatenate)
    v_ref[0] = c2w_ref[0, 0] * n0 + c2w_ref[0, 1] * n1 + c2w_ref[0, 2] * n2
    v_ref[1] = c2w_ref[1, 0] * n0 + c2w_ref[1, 1] * n1 + c2w_ref[1, 2] * n2
    v_ref[2] = c2w_ref[2, 0] * n0 + c2w_ref[2, 1] * n1 + c2w_ref[2, 2] * n2

    # ---- L1 photometric partial sums (pure VPU adds; padding contributes 0)
    diff = jnp.abs(pred_ref[...] - gt_ref[...])                  # (3, R, 128)
    part = jnp.sum(diff.reshape(-1, SUBLANE, LANE), axis=0)      # (8, 128)
    acc_ref[0] = acc_ref[0] + part


def fused_rays_and_l1(pix, rays_gt, color_fine, kinv, c2w):
    """pix / rays_gt / color_fine: (3, N) f32; kinv: (3,3); c2w: (3,4).
    Returns (rays_v (3, N) f32, l1_sum scalar f32 = sum |color_fine - rays_gt|)."""
    n = pix.shape[1]
    m_pad, r = _choose_blocking(n)
    n_pad = m_pad * LANE
    blocks = m_pad // r
    bps = blocks // NUM_SPLITS          # blocks per core-split

    pix_b = _to_blocked(pix, n_pad)
    gt_b = _to_blocked(rays_gt, n_pad)
    pred_b = _to_blocked(color_fine, n_pad)

    def data_map(c, i):
        return (0, c * bps + i, 0)

    v_b, loss_parts = pl.pallas_call(
        _fused_kernel,
        out_shape=(
            jax.ShapeDtypeStruct((3, m_pad, LANE), jnp.float32),
            jax.ShapeDtypeStruct((NUM_SPLITS, SUBLANE, LANE), jnp.float32),
        ),
        grid_spec=pltpu.PrefetchScalarGridSpec(
            num_scalar_prefetch=0,
            grid=(NUM_SPLITS, bps),
            in_specs=[
                pl.BlockSpec(memory_space=pltpu.MemorySpace.SMEM),   # kinv
                pl.BlockSpec(memory_space=pltpu.MemorySpace.SMEM),   # c2w
                pl.BlockSpec((3, r, LANE), data_map),                # pix
                pl.BlockSpec((3, r, LANE), data_map),                # gt
                pl.BlockSpec((3, r, LANE), data_map),                # pred
            ],
            out_specs=[
                pl.BlockSpec((3, r, LANE), data_map),                # rays_v
                pl.BlockSpec((1, SUBLANE, LANE), lambda c, i: (c, 0, 0)),
            ],
        ),
        compiler_params=pltpu.CompilerParams(
            dimension_semantics=("parallel", "arbitrary")),
    )(kinv, c2w, pix_b, gt_b, pred_b)

    rays_v = v_b.reshape(3, n_pad)[:, :n]
    return rays_v, jnp.sum(loss_parts)


# ----------------------------------------------------------------------------
# Plain-JAX glue (matches the PyTorch module's small helpers)
# ----------------------------------------------------------------------------
def get_transform_matrix(translation, quaternion):
    """quaternion (w,x,y,z) + translation -> 4x4 transform (and its inverse)."""
    w, x, y, z = quaternion
    m = jnp.array(
        [[1 - 2 * (y**2 + z**2), 2 * (x * y - z * w), 2 * (x * z + y * w), translation[0]],
         [2 * (x * y + z * w), 1 - 2 * (x**2 + z**2), 2 * (y * z - x * w), translation[1]],
         [2 * (x * z - y * w), 2 * (y * z + x * w), 1 - 2 * (x**2 + y**2), translation[2]],
         [0.0, 0.0, 0.0, 1.0]], dtype=jnp.float32)
    return m, jnp.linalg.inv(m)


def make_pixel_grid(W, H):
    """Replicates meshgrid + transpose(0,1) + reshape(-1,3) ordering: flat index
    n = h*W + w carries (pixel_x=w, pixel_y=h, 1).  Returns (3, H*W)."""
    ws = jnp.arange(W, dtype=jnp.float32)
    hs = jnp.arange(H, dtype=jnp.float32)
    px = jnp.tile(ws, (H,))                       # w varies fastest
    py = jnp.repeat(hs, W)
    ones = jnp.ones_like(px)
    return jnp.stack([px, py, ones], axis=0)      # (3, H*W)


@functools.partial(jax.jit, static_argnames=("max_f",))
def genshin_forward(pix, kinv, c2w, rays_gt, color_fine, max_f):
    """One frame of GenshinStart.forward():
       ray generation + L1 photometric loss in one fused Pallas kernel."""
    rays_v, l1 = fused_rays_and_l1(pix, rays_gt, color_fine, kinv, c2w)
    # rays_o is a constant broadcast of the camera translation: no kernel work.
    rays_o = jnp.broadcast_to(c2w[:, 3:4], rays_v.shape)
    rays_sum = pix.shape[1]
    loss = l1 / rays_sum / max_f
    return loss, rays_o, rays_v


if __name__ == "__main__":
    key = jax.random.PRNGKey(0)
    k1, k2 = jax.random.split(key)

    # small image: H=16, W=32 -> N = 512 rays
    H, W = 16, 32
    N = H * W
    max_f = 2  # one simulated frame, matching `for i in trange(1, max_f)`

    # deterministic camera intrinsics
    fx, fy, cx, cy = 35.0, 35.0, (W - 1) / 2.0, (H - 1) / 2.0
    K = jnp.array([[fx, 0.0, cx],
                   [0.0, fy, cy],
                   [0.0, 0.0, 1.0]], dtype=jnp.float32)
    kinv = jnp.linalg.inv(K)

    # "physical simulator" output stand-in: deterministic rigid transform
    quaternion = jnp.array([0.9238795, 0.0, 0.3826834, 0.0], dtype=jnp.float32)
    translation = jnp.array([0.1, -0.2, 3.0], dtype=jnp.float32)
    transform, transform_inv = get_transform_matrix(translation, quaternion)
    c2w = transform[:3, :4]

    # pixel grid and synthetic image / rendered colors
    pix = make_pixel_grid(W, H)                                   # (3, N)
    rays_gt = jax.random.uniform(k1, (3, N), dtype=jnp.float32)   # images[i]/256 stand-in
    color_fine = jax.random.uniform(k2, (3, N), dtype=jnp.float32)

    loss, rays_o, rays_v = genshin_forward(pix, kinv, c2w, rays_gt, color_fine, max_f)
    jax.block_until_ready((loss, rays_o, rays_v))

    # ---- reference check in plain JAX ----
    d = kinv @ pix                                                # (3, N)
    d = d / jnp.linalg.norm(d, axis=0, keepdims=True)
    v_ref = c2w[:, :3] @ d
    o_ref = jnp.broadcast_to(c2w[:, 3:4], (3, N))
    loss_ref = jnp.sum(jnp.abs(color_fine - rays_gt)) / N / max_f

    assert jnp.allclose(rays_v, v_ref, atol=1e-4), "rays_v mismatch"
    assert jnp.allclose(rays_o, o_ref, atol=1e-5), "rays_o mismatch"
    assert jnp.allclose(loss, loss_ref, atol=1e-4), "loss mismatch"

    print("KERNEL_OK")
</pallas_src>

<mosaic_0001>
module attributes {stable_mosaic.version = 11 : i64} {
  func.func @_fused_kernel(%arg0: i32, %arg1: i32, %arg2: memref<3x3xf32, #tpu.memory_space<smem>>, %arg3: memref<3x4xf32, #tpu.memory_space<smem>>, %arg4: memref<3x8x128xf32, #tpu.memory_space<vmem>>, %arg5: memref<3x8x128xf32, #tpu.memory_space<vmem>>, %arg6: memref<3x8x128xf32, #tpu.memory_space<vmem>>, %arg7: memref<3x8x128xf32, #tpu.memory_space<vmem>>, %arg8: memref<1x8x128xf32, #tpu.memory_space<vmem>>) attributes {dimension_semantics = [#tpu.dimension_semantics<parallel>, #tpu.dimension_semantics<arbitrary>], iteration_bounds = array<i64: 2, 1>, scalar_prefetch = 0 : i64, scratch_operands = 0 : i64, tpu.core_type = #tpu.core_type<tc>, window_params = [{transform_indices = @transform_0, window_bounds = array<i64: 3, 3>}, {transform_indices = @transform_1, window_bounds = array<i64: 3, 4>}, {transform_indices = @transform_2, window_bounds = array<i64: 3, 8, 128>}, {transform_indices = @transform_3, window_bounds = array<i64: 3, 8, 128>}, {transform_indices = @transform_4, window_bounds = array<i64: 3, 8, 128>}, {transform_indices = @transform_5, window_bounds = array<i64: 3, 8, 128>}, {transform_indices = @transform_6, window_bounds = array<i64: 1, 8, 128>}]} {
    %c0_i32 = arith.constant 0 : i32
    %0 = arith.cmpi eq, %arg1, %c0_i32 : i32
    %1 = arith.extui %0 : i1 to i32
    %c0_i32_0 = arith.constant 0 : i32
    %2 = arith.cmpi ne, %1, %c0_i32_0 : i32
    scf.if %2 {
      %cst_65 = arith.constant 0.000000e+00 : f32
      %106 = vector.broadcast %cst_65 : f32 to vector<1x8x128xf32>
      %c0_66 = arith.constant 0 : index
      %c0_67 = arith.constant 0 : index
      %c0_68 = arith.constant 0 : index
      %107 = vector.load %arg8[%c0_66, %c0_67, %c0_68] : memref<1x8x128xf32, #tpu.memory_space<vmem>>, vector<1x8x128xf32>
      tpu.vector_store %arg8[%c0_66, %c0_67, %c0_68], %106 {strides = array<i32>} : memref<1x8x128xf32, #tpu.memory_space<vmem>>, vector<1x8x128xf32>,
    } else {
    }
    %c0 = arith.constant 0 : index
    %c0_1 = arith.constant 0 : index
    %c0_2 = arith.constant 0 : index
    %3 = vector.load %arg4[%c0, %c0_1, %c0_2] : memref<3x8x128xf32, #tpu.memory_space<vmem>>, vector<1x8x128xf32>
    %4 = vector.shape_cast %3 : vector<1x8x128xf32> to vector<8x128xf32>
    %c1 = arith.constant 1 : index
    %c0_3 = arith.constant 0 : index
    %c0_4 = arith.constant 0 : index
    %5 = vector.load %arg4[%c1, %c0_3, %c0_4] : memref<3x8x128xf32, #tpu.memory_space<vmem>>, vector<1x8x128xf32>
    %6 = vector.shape_cast %5 : vector<1x8x128xf32> to vector<8x128xf32>
    %c2 = arith.constant 2 : index
    %c0_5 = arith.constant 0 : index
    %c0_6 = arith.constant 0 : index
    %7 = vector.load %arg4[%c2, %c0_5, %c0_6] : memref<3x8x128xf32, #tpu.memory_space<vmem>>, vector<1x8x128xf32>
    %8 = vector.shape_cast %7 : vector<1x8x128xf32> to vector<8x128xf32>
    %c0_7 = arith.constant 0 : index
    %c0_8 = arith.constant 0 : index
    %9 = memref.load %arg2[%c0_7, %c0_8] : memref<3x3xf32, #tpu.memory_space<smem>>
    %10 = vector.broadcast %9 : f32 to vector<8x128xf32>
    %11 = arith.mulf %10, %4 : vector<8x128xf32>
    %c0_9 = arith.constant 0 : index
    %c1_10 = arith.constant 1 : index
    %12 = memref.load %arg2[%c0_9, %c1_10] : memref<3x3xf32, #tpu.memory_space<smem>>
    %13 = vector.broadcast %12 : f32 to vector<8x128xf32>
    %14 = arith.mulf %13, %6 : vector<8x128xf32>
    %15 = arith.addf %11, %14 : vector<8x128xf32>
    %c0_11 = arith.constant 0 : index
    %c2_12 = arith.constant 2 : index
    %16 = memref.load %arg2[%c0_11, %c2_12] : memref<3x3xf32, #tpu.memory_space<smem>>
    %17 = vector.broadcast %16 : f32 to vector<8x128xf32>
    %18 = arith.mulf %17, %8 : vector<8x128xf32>
    %19 = arith.addf %15, %18 : vector<8x128xf32>
    %c1_13 = arith.constant 1 : index
    %c0_14 = arith.constant 0 : index
    %20 = memref.load %arg2[%c1_13, %c0_14] : memref<3x3xf32, #tpu.memory_space<smem>>
    %21 = vector.broadcast %20 : f32 to vector<8x128xf32>
    %22 = arith.mulf %21, %4 : vector<8x128xf32>
    %c1_15 = arith.constant 1 : index
    %c1_16 = arith.constant 1 : index
    %23 = memref.load %arg2[%c1_15, %c1_16] : memref<3x3xf32, #tpu.memory_space<smem>>
    %24 = vector.broadcast %23 : f32 to vector<8x128xf32>
    %25 = arith.mulf %24, %6 : vector<8x128xf32>
    %26 = arith.addf %22, %25 : vector<8x128xf32>
    %c1_17 = arith.constant 1 : index
    %c2_18 = arith.constant 2 : index
    %27 = memref.load %arg2[%c1_17, %c2_18] : memref<3x3xf32, #tpu.memory_space<smem>>
    %28 = vector.broadcast %27 : f32 to vector<8x128xf32>
    %29 = arith.mulf %28, %8 : vector<8x128xf32>
    %30 = arith.addf %26, %29 : vector<8x128xf32>
    %c2_19 = arith.constant 2 : index
    %c0_20 = arith.constant 0 : index
    %31 = memref.load %arg2[%c2_19, %c0_20] : memref<3x3xf32, #tpu.memory_space<smem>>
    %32 = vector.broadcast %31 : f32 to vector<8x128xf32>
    %33 = arith.mulf %32, %4 : vector<8x128xf32>
    %c2_21 = arith.constant 2 : index
    %c1_22 = arith.constant 1 : index
    %34 = memref.load %arg2[%c2_21, %c1_22] : memref<3x3xf32, #tpu.memory_space<smem>>
    %35 = vector.broadcast %34 : f32 to vector<8x128xf32>
    %36 = arith.mulf %35, %6 : vector<8x128xf32>
    %37 = arith.addf %33, %36 : vector<8x128xf32>
    %c2_23 = arith.constant 2 : index
    %c2_24 = arith.constant 2 : index
    %38 = memref.load %arg2[%c2_23, %c2_24] : memref<3x3xf32, #tpu.memory_space<smem>>
    %39 = vector.broadcast %38 : f32 to vector<8x128xf32>
    %40 = arith.mulf %39, %8 : vector<8x128xf32>
    %41 = arith.addf %37, %40 : vector<8x128xf32>
    %42 = arith.mulf %19, %19 : vector<8x128xf32>
    %43 = arith.mulf %30, %30 : vector<8x128xf32>
    %44 = arith.addf %42, %43 : vector<8x128xf32>
    %45 = arith.mulf %41, %41 : vector<8x128xf32>
    %46 = arith.addf %44, %45 : vector<8x128xf32>
    %cst = arith.constant 9.99999968E-21 : f32
    %47 = vector.broadcast %cst : f32 to vector<8x128xf32>
    %48 = arith.maximumf %46, %47 : vector<8x128xf32>
    %49 = math.rsqrt %48 : vector<8x128xf32>
    %50 = arith.mulf %19, %49 : vector<8x128xf32>
    %51 = arith.mulf %30, %49 : vector<8x128xf32>
    %52 = arith.mulf %41, %49 : vector<8x128xf32>
    %c0_25 = arith.constant 0 : index
    %c0_26 = arith.constant 0 : index
    %53 = memref.load %arg3[%c0_25, %c0_26] : memref<3x4xf32, #tpu.memory_space<smem>>
    %54 = vector.broadcast %53 : f32 to vector<8x128xf32>
    %55 = arith.mulf %54, %50 : vector<8x128xf32>
    %c0_27 = arith.constant 0 : index
    %c1_28 = arith.constant 1 : index
    %56 = memref.load %arg3[%c0_27, %c1_28] : memref<3x4xf32, #tpu.memory_space<smem>>
    %57 = vector.broadcast %56 : f32 to vector<8x128xf32>
    %58 = arith.mulf %57, %51 : vector<8x128xf32>
    %59 = arith.addf %55, %58 : vector<8x128xf32>
    %c0_29 = arith.constant 0 : index
    %c2_30 = arith.constant 2 : index
    %60 = memref.load %arg3[%c0_29, %c2_30] : memref<3x4xf32, #tpu.memory_space<smem>>
    %61 = vector.broadcast %60 : f32 to vector<8x128xf32>
    %62 = arith.mulf %61, %52 : vector<8x128xf32>
    %63 = arith.addf %59, %62 : vector<8x128xf32>
    %c0_31 = arith.constant 0 : index
    %c0_32 = arith.constant 0 : index
    %c0_33 = arith.constant 0 : index
    %64 = vector.load %arg7[%c0_31, %c0_32, %c0_33] : memref<3x8x128xf32, #tpu.memory_space<vmem>>, vector<1x8x128xf32>
    %65 = vector.shape_cast %64 : vector<1x8x128xf32> to vector<8x128xf32>
    %66 = vector.shape_cast %63 : vector<8x128xf32> to vector<1x8x128xf32>
    tpu.vector_store %arg7[%c0_31, %c0_32, %c0_33], %66 {strides = array<i32>} : memref<3x8x128xf32, #tpu.memory_space<vmem>>, vector<1x8x128xf32>,
    %c1_34 = arith.constant 1 : index
    %c0_35 = arith.constant 0 : index
    %67 = memref.load %arg3[%c1_34, %c0_35] : memref<3x4xf32, #tpu.memory_space<smem>>
    %68 = vector.broadcast %67 : f32 to vector<8x128xf32>
    %69 = arith.mulf %68, %50 : vector<8x128xf32>
    %c1_36 = arith.constant 1 : index
    %c1_37 = arith.constant 1 : index
    %70 = memref.load %arg3[%c1_36, %c1_37] : memref<3x4xf32, #tpu.memory_space<smem>>
    %71 = vector.broadcast %70 : f32 to vector<8x128xf32>
    %72 = arith.mulf %71, %51 : vector<8x128xf32>
    %73 = arith.addf %69, %72 : vector<8x128xf32>
    %c1_38 = arith.constant 1 : index
    %c2_39 = arith.constant 2 : index
    %74 = memref.load %arg3[%c1_38, %c2_39] : memref<3x4xf32, #tpu.memory_space<smem>>
    %75 = vector.broadcast %74 : f32 to vector<8x128xf32>
    %76 = arith.mulf %75, %52 : vector<8x128xf32>
    %77 = arith.addf %73, %76 : vector<8x128xf32>
    %c1_40 = arith.constant 1 : index
    %c0_41 = arith.constant 0 : index
    %c0_42 = arith.constant 0 : index
    %78 = vector.load %arg7[%c1_40, %c0_41, %c0_42] : memref<3x8x128xf32, #tpu.memory_space<vmem>>, vector<1x8x128xf32>
    %79 = vector.shape_cast %78 : vector<1x8x128xf32> to vector<8x128xf32>
    %80 = vector.shape_cast %77 : vector<8x128xf32> to vector<1x8x128xf32>
    tpu.vector_store %arg7[%c1_40, %c0_41, %c0_42], %80 {strides = array<i32>} : memref<3x8x128xf32, #tpu.memory_space<vmem>>, vector<1x8x128xf32>,
    %c2_43 = arith.constant 2 : index
    %c0_44 = arith.constant 0 : index
    %81 = memref.load %arg3[%c2_43, %c0_44] : memref<3x4xf32, #tpu.memory_space<smem>>
    %82 = vector.broadcast %81 : f32 to vector<8x128xf32>
    %83 = arith.mulf %82, %50 : vector<8x128xf32>
    %c2_45 = arith.constant 2 : index
    %c1_46 = arith.constant 1 : index
    %84 = memref.load %arg3[%c2_45, %c1_46] : memref<3x4xf32, #tpu.memory_space<smem>>
    %85 = vector.broadcast %84 : f32 to vector<8x128xf32>
    %86 = arith.mulf %85, %51 : vector<8x128xf32>
    %87 = arith.addf %83, %86 : vector<8x128xf32>
    %c2_47 = arith.constant 2 : index
    %c2_48 = arith.constant 2 : index
    %88 = memref.load %arg3[%c2_47, %c2_48] : memref<3x4xf32, #tpu.memory_space<smem>>
    %89 = vector.broadcast %88 : f32 to vector<8x128xf32>
    %90 = arith.mulf %89, %52 : vector<8x128xf32>
    %91 = arith.addf %87, %90 : vector<8x128xf32>
    %c2_49 = arith.constant 2 : index
    %c0_50 = arith.constant 0 : index
    %c0_51 = arith.constant 0 : index
    %92 = vector.load %arg7[%c2_49, %c0_50, %c0_51] : memref<3x8x128xf32, #tpu.memory_space<vmem>>, vector<1x8x128xf32>
    %93 = vector.shape_cast %92 : vector<1x8x128xf32> to vector<8x128xf32>
    %94 = vector.shape_cast %91 : vector<8x128xf32> to vector<1x8x128xf32>
    tpu.vector_store %arg7[%c2_49, %c0_50, %c0_51], %94 {strides = array<i32>} : memref<3x8x128xf32, #tpu.memory_space<vmem>>, vector<1x8x128xf32>,
    %c0_52 = arith.constant 0 : index
    %c0_53 = arith.constant 0 : index
    %c0_54 = arith.constant 0 : index
    %95 = vector.load %arg6[%c0_52, %c0_53, %c0_54] : memref<3x8x128xf32, #tpu.memory_space<vmem>>, vector<3x8x128xf32>
    %c0_55 = arith.constant 0 : index
    %c0_56 = arith.constant 0 : index
    %c0_57 = arith.constant 0 : index
    %96 = vector.load %arg5[%c0_55, %c0_56, %c0_57] : memref<3x8x128xf32, #tpu.memory_space<vmem>>, vector<3x8x128xf32>
    %97 = arith.subf %95, %96 : vector<3x8x128xf32>
    %98 = math.absf %97 : vector<3x8x128xf32>
    %cst_58 = arith.constant dense<0.000000e+00> : vector<8x128xf32>
    %99 = vector.multi_reduction <add>, %98, %cst_58 [0] : vector<3x8x128xf32> to vector<8x128xf32>
    %c0_59 = arith.constant 0 : index
    %c0_60 = arith.constant 0 : index
    %c0_61 = arith.constant 0 : index
    %100 = vector.load %arg8[%c0_59, %c0_60, %c0_61] : memref<1x8x128xf32, #tpu.memory_space<vmem>>, vector<1x8x128xf32>
    %101 = vector.shape_cast %100 : vector<1x8x128xf32> to vector<8x128xf32>
    %102 = arith.addf %101, %99 : vector<8x128xf32>
    %c0_62 = arith.constant 0 : index
    %c0_63 = arith.constant 0 : index
    %c0_64 = arith.constant 0 : index
    %103 = vector.load %arg8[%c0_62, %c0_63, %c0_64] : memref<1x8x128xf32, #tpu.memory_space<vmem>>, vector<1x8x128xf32>
    %104 = vector.shape_cast %103 : vector<1x8x128xf32> to vector<8x128xf32>
    %105 = vector.shape_cast %102 : vector<8x128xf32> to vector<1x8x128xf32>
    tpu.vector_store %arg8[%c0_62, %c0_63, %c0_64], %105 {strides = array<i32>} : memref<1x8x128xf32, #tpu.memory_space<vmem>>, vector<1x8x128xf32>,
    return
  }
  func.func @transform_0(%arg0: i32, %arg1: i32) -> (i32, i32) {
    %c0_i32 = arith.constant 0 : i32
    %c0_i32_0 = arith.constant 0 : i32
    %c0_i32_1 = arith.constant 0 : i32
    return %c0_i32, %c0_i32_0 : i32, i32
  }
  func.func @transform_1(%arg0: i32, %arg1: i32) -> (i32, i32) {
    %c0_i32 = arith.constant 0 : i32
    %c0_i32_0 = arith.constant 0 : i32
    %c0_i32_1 = arith.constant 0 : i32
    return %c0_i32, %c0_i32_0 : i32, i32
  }
  func.func @transform_2(%arg0: i32, %arg1: i32) -> (i32, i32, i32) {
    %c1_i32 = arith.constant 1 : i32
    %0 = arith.muli %arg0, %c1_i32 : i32
    %1 = arith.addi %0, %arg1 : i32
    %c0_i32 = arith.constant 0 : i32
    %c0_i32_0 = arith.constant 0 : i32
    %c0_i32_1 = arith.constant 0 : i32
    return %c0_i32, %1, %c0_i32_0 : i32, i32, i32
  }
  func.func @transform_3(%arg0: i32, %arg1: i32) -> (i32, i32, i32) {
    %c1_i32 = arith.constant 1 : i32
    %0 = arith.muli %arg0, %c1_i32 : i32
    %1 = arith.addi %0, %arg1 : i32
    %c0_i32 = arith.constant 0 : i32
    %c0_i32_0 = arith.constant 0 : i32
    %c0_i32_1 = arith.constant 0 : i32
    return %c0_i32, %1, %c0_i32_0 : i32, i32, i32
  }
  func.func @transform_4(%arg0: i32, %arg1: i32) -> (i32, i32, i32) {
    %c1_i32 = arith.constant 1 : i32
    %0 = arith.muli %arg0, %c1_i32 : i32
    %1 = arith.addi %0, %arg1 : i32
    %c0_i32 = arith.constant 0 : i32
    %c0_i32_0 = arith.constant 0 : i32
    %c0_i32_1 = arith.constant 0 : i32
    return %c0_i32, %1, %c0_i32_0 : i32, i32, i32
  }
  func.func @transform_5(%arg0: i32, %arg1: i32) -> (i32, i32, i32) {
    %c1_i32 = arith.constant 1 : i32
    %0 = arith.muli %arg0, %c1_i32 : i32
    %1 = arith.addi %0, %arg1 : i32
    %c0_i32 = arith.constant 0 : i32
    %c0_i32_0 = arith.constant 0 : i32
    %c0_i32_1 = arith.constant 0 : i32
    return %c0_i32, %1, %c0_i32_0 : i32, i32, i32
  }
  func.func @transform_6(%arg0: i32, %arg1: i32) -> (i32, i32, i32) {
    %c0_i32 = arith.constant 0 : i32
    %c0_i32_0 = arith.constant 0 : i32
    %c0_i32_1 = arith.constant 0 : i32
    return %arg0, %c0_i32, %c0_i32_0 : i32, i32, i32
  }
}

</mosaic_0001>

<llo_original>
// kernel: genshin_forward.1
$region0: #{genshin_forward.1}
  #allocation0 [shape = 'u32[]', space=smem, size = 0x4, offset = 0x4, fixed_abs, tag = 'smem constant byte address 0x4 - core index']
  #allocation1 [shape = 'u32[144,128]{1,0:T(1,128)}', space=vmem, size = 0x12000, scoped, tag = 'internal scratch']
  %s0 = inlined_call_operand.vmem [shape: f32[3,3], index: 0, kind: input, shape index: {}]
  %s1 = inlined_call_operand.vmem [shape: f32[3,4], index: 1, kind: input, shape index: {}]
  %s2 = inlined_call_operand.vmem [shape: f32[3,16,128], index: 2, kind: input, shape index: {}]
  %s3 = inlined_call_operand.vmem [shape: f32[3,16,128], index: 3, kind: input, shape index: {}]
  %s4 = inlined_call_operand.vmem [shape: f32[3,16,128], index: 4, kind: input, shape index: {}]
  %s5 = inlined_call_operand.vmem [shape: f32[3,16,128], index: 5, kind: output, shape index: {0}]
  %s6 = inlined_call_operand.vmem [shape: f32[2,8,128], index: 6, kind: output, shape index: {1}]
  %7 = xla_tuple %s5, %s6
  %s8 = sld [smem:[#allocation0]]
  $region221: #{genshin_forward.1} parent=0
    _
  %s10 = ssub.s32 1, %s8
  %s11 = scalar_select 0, %s10, %s8
  $region1: #{genshin_forward.1} parent=0
    #allocation2 [shape = 'u8[2048]{0}', space=smem, size = 0x800, scoped, tag = 'input window, operand 0, single buffered']
    #allocation3 [shape = 's32[2]{0}', space=sflag, size = 0x8, scoped, tag = 'scoped memory for genshin_forward.1']
    #allocation4 [shape = 'u8[2048]{0}', space=smem, size = 0x800, scoped, tag = 'input window, operand 1, single buffered']
    #allocation5 [shape = 's32[1]{0}', space=sflag, size = 0x4, scoped, tag = 'scoped memory for genshin_forward.1']
    #allocation6 [shape = 'u8[24576]{0}', space=vmem, size = 0x6000, scoped, tag = 'input window, operand 2']
    #allocation7 [shape = 'u8[24576]{0}', space=vmem, size = 0x6000, scoped, tag = 'input window, operand 3']
    #allocation8 [shape = 'u8[24576]{0}', space=vmem, size = 0x6000, scoped, tag = 'input window, operand 4']
    #allocation9 [shape = 'u8[24576]{0}', space=vmem, size = 0x6000, scoped, tag = 'output window, operand 0']
    %12 = vsyncpa [#allocation3], 0
    %13 = vsyncpa [#allocation5], 0
    loop: start=0, step=1, limit=4
    $region2: #{genshin_forward.1} parent=1 // loop_pre_header
      _
    $region3: #{genshin_forward.1} parent=1 // loop_header
      %s15 = sphi 0, %s19
      %p16 = scmp.ge.s32.totalorder %s15, 4
      %s22 = sphi 0, %s34
      %s23 = sphi 0, %s30
      %s24 = sphi 0, %s22
      %s25 = sphi 0, %s23
      %s26 = sphi 0, %s24
      %s27 = sphi 0, %s25
      %s35 = sphi 0, %s35
      %s37 = sphi 0, %s35
      %s38 = sphi 0, %s37
      %s52 = sphi 0, %s38
      %s56 = sphi 0, %s56
      %s58 = sphi 0, %s56
      %s59 = sphi 0, %s58
      %s73 = sphi 0, %s59
      %s81 = sphi 0, %s83
      %s84 = sphi 0, %s81
      %s85 = sphi 0, %s84
      %s101 = sphi 0, %s85
      %s109 = sphi 0, %s111
      %s112 = sphi 0, %s109
      %s113 = sphi 0, %s112
      %s129 = sphi 0, %s113
      %s137 = sphi 0, %s139
      %s140 = sphi 0, %s137
      %s141 = sphi 0, %s140
      %s157 = sphi 0, %s141
      %s165 = sphi 0, %s167
      %s168 = sphi 0, %s165
      %s169 = sphi 0, %s168
      %s185 = sphi 0, %s169
      %s191 = sphi 0, %s193
      %s194 = sphi 0, %s191
      %s195 = sphi 0, %s194
      %s211 = sphi 0, %s195
    $region4: #{genshin_forward.1} parent=1 // loop_header_branch
      %18 = sbr.rel (%p16) target = $region8
    $region5: #{genshin_forward.1} parent=1 // loop_body
      %s20 = ssub.s32 %s15, 1
      %s21 = ssub.s32 %s15, 2
      %s28 = sadd.s32 1, %s23
      %p29 = scmp.ge.s32.totalorder %s28, 1
      %s30 = scalar_select %p29, 0, %s28
      %s31 = sadd.s32 1, %s22
      %s32 = scalar_select %p29, %s31, %s22
      %p33 = scmp.ge.s32.totalorder %s32, 2
      %s34 = scalar_select %p33, 0, %s32
      %s36 = sadd.s32 %s35, 1
      %p39 = scmp.eq.s32.totalorder %s15, 1
      %p40 = scmp.ne.s32.totalorder %s35, %s37
      %p41 = scmp.eq.s32.totalorder %s15, 0
      %p42 = por %p40, %p41
      %p43 = scmp.ne.s32.totalorder %s35, %s37
      %p44 = scmp.eq.s32.totalorder %s20, 1
      %p45 = por %p43, %p44
      %p46 = scmp.ne.s32.totalorder %s37, %s38
      %p47 = scmp.eq.s32.totalorder %s20, 0
      %p48 = por %p46, %p47
      %p49 = scmp.ne.s32.totalorder %s37, %s38
      %p50 = scmp.eq.s32.totalorder %s21, 1
      %p51 = por %p49, %p50
      %p53 = scmp.ne.s32.totalorder %s38, %s52
      %p54 = scmp.eq.s32.totalorder %s21, 0
      %p55 = por %p53, %p54
      %s57 = sadd.s32 %s56, 1
      %p60 = scmp.eq.s32.totalorder %s15, 1
      %p61 = scmp.ne.s32.totalorder %s56, %s58
      %p62 = scmp.eq.s32.totalorder %s15, 0
      %p63 = por %p61, %p62
      %p64 = scmp.ne.s32.totalorder %s56, %s58
      %p65 = scmp.eq.s32.totalorder %s20, 1
      %p66 = por %p64, %p65
      %p67 = scmp.ne.s32.totalorder %s58, %s59
      %p68 = scmp.eq.s32.totalorder %s20, 0
      %p69 = por %p67, %p68
      %p70 = scmp.ne.s32.totalorder %s58, %s59
      %p71 = scmp.eq.s32.totalorder %s21, 1
      %p72 = por %p70, %p71
      %p74 = scmp.ne.s32.totalorder %s59, %s73
      %p75 = scmp.eq.s32.totalorder %s21, 0
      %p76 = por %p74, %p75
      %s77 = sadd.s32 %s22, %s23
      %s78 = sadd.s32 %s34, %s30
      %s79 = ssub.s32 %s77, %s78
      %p80 = scmp.eq.s32.totalorder %s79, 0
      %s82 = sadd.s32 %s81, 1
      %s83 = scalar_select %p80, %s81, %s82
      %p86 = pneg %p80
      %p87 = scmp.eq.s32.totalorder %s15, 1
      %p88 = por %p86, %p87
      %p89 = scmp.ne.s32.totalorder %s81, %s84
      %p90 = scmp.eq.s32.totalorder %s15, 0
      %p91 = por %p89, %p90
      %p92 = scmp.ne.s32.totalorder %s81, %s84
      %p93 = scmp.eq.s32.totalorder %s20, 1
      %p94 = por %p92, %p93
      %p95 = scmp.ne.s32.totalorder %s84, %s85
      %p96 = scmp.eq.s32.totalorder %s20, 0
      %p97 = por %p95, %p96
      %p98 = scmp.ne.s32.totalorder %s84, %s85
      %p99 = scmp.eq.s32.totalorder %s21, 1
      %p100 = por %p98, %p99
      %p102 = scmp.ne.s32.totalorder %s85, %s101
      %p103 = scmp.eq.s32.totalorder %s21, 0
      %p104 = por %p102, %p103
      %s105 = sadd.s32 %s22, %s23
      %s106 = sadd.s32 %s34, %s30
      %s107 = ssub.s32 %s105, %s106
      %p108 = scmp.eq.s32.totalorder %s107, 0
      %s110 = sadd.s32 %s109, 1
      %s111 = scalar_select %p108, %s109, %s110
      %p114 = pneg %p108
      %p115 = scmp.eq.s32.totalorder %s15, 1
      %p116 = por %p114, %p115
      %p117 = scmp.ne.s32.totalorder %s109, %s112
      %p118 = scmp.eq.s32.totalorder %s15, 0
      %p119 = por %p117, %p118
      %p120 = scmp.ne.s32.totalorder %s109, %s112
      %p121 = scmp.eq.s32.totalorder %s20, 1
      %p122 = por %p120, %p121
      %p123 = scmp.ne.s32.totalorder %s112, %s113
      %p124 = scmp.eq.s32.totalorder %s20, 0
      %p125 = por %p123, %p124
      %p126 = scmp.ne.s32.totalorder %s112, %s113
      %p127 = scmp.eq.s32.totalorder %s21, 1
      %p128 = por %p126, %p127
      %p130 = scmp.ne.s32.totalorder %s113, %s129
      %p131 = scmp.eq.s32.totalorder %s21, 0
      %p132 = por %p130, %p131
      %s133 = sadd.s32 %s22, %s23
      %s134 = sadd.s32 %s34, %s30
      %s135 = ssub.s32 %s133, %s134
      %p136 = scmp.eq.s32.totalorder %s135, 0
      %s138 = sadd.s32 %s137, 1
      %s139 = scalar_select %p136, %s137, %s138
      %p142 = pneg %p136
      %p143 = scmp.eq.s32.totalorder %s15, 1
      %p144 = por %p142, %p143
      %p145 = scmp.ne.s32.totalorder %s137, %s140
      %p146 = scmp.eq.s32.totalorder %s15, 0
      %p147 = por %p145, %p146
      %p148 = scmp.ne.s32.totalorder %s137, %s140
      %p149 = scmp.eq.s32.totalorder %s20, 1
      %p150 = por %p148, %p149
      %p151 = scmp.ne.s32.totalorder %s140, %s141
      %p152 = scmp.eq.s32.totalorder %s20, 0
      %p153 = por %p151, %p152
      %p154 = scmp.ne.s32.totalorder %s140, %s141
      %p155 = scmp.eq.s32.totalorder %s21, 1
      %p156 = por %p154, %p155
      %p158 = scmp.ne.s32.totalorder %s141, %s157
      %p159 = scmp.eq.s32.totalorder %s21, 0
      %p160 = por %p158, %p159
      %s161 = sadd.s32 %s22, %s23
      %s162 = sadd.s32 %s34, %s30
      %s163 = ssub.s32 %s161, %s162
      %p164 = scmp.eq.s32.totalorder %s163, 0
      %s166 = sadd.s32 %s165, 1
      %s167 = scalar_select %p164, %s165, %s166
      %p170 = pneg %p164
      %p171 = scmp.eq.s32.totalorder %s15, 1
      %p172 = por %p170, %p171
      %p173 = scmp.ne.s32.totalorder %s165, %s168
      %p174 = scmp.eq.s32.totalorder %s15, 0
      %p175 = por %p173, %p174
      %p176 = scmp.ne.s32.totalorder %s165, %s168
      %p177 = scmp.eq.s32.totalorder %s20, 1
      %p178 = por %p176, %p177
      %p179 = scmp.ne.s32.totalorder %s168, %s169
      %p180 = scmp.eq.s32.totalorder %s20, 0
      %p181 = por %p179, %p180
      %p182 = scmp.ne.s32.totalorder %s168, %s169
      %p183 = scmp.eq.s32.totalorder %s21, 1
      %p184 = por %p182, %p183
      %p186 = scmp.ne.s32.totalorder %s169, %s185
      %p187 = scmp.eq.s32.totalorder %s21, 0
      %p188 = por %p186, %p187
      %s189 = ssub.s32 %s22, %s34
      %p190 = scmp.eq.s32.totalorder %s189, 0
      %s192 = sadd.s32 %s191, 1
      %s193 = scalar_select %p190, %s191, %s192
      %p196 = pneg %p190
      %p197 = scmp.eq.s32.totalorder %s15, 1
      %p198 = por %p196, %p197
      %p199 = scmp.ne.s32.totalorder %s191, %s194
      %p200 = scmp.eq.s32.totalorder %s15, 0
      %p201 = por %p199, %p200
      %p202 = scmp.ne.s32.totalorder %s191, %s194
      %p203 = scmp.eq.s32.totalorder %s20, 1
      %p204 = por %p202, %p203
      %p205 = scmp.ne.s32.totalorder %s194, %s195
      %p206 = scmp.eq.s32.totalorder %s20, 0
      %p207 = por %p205, %p206
      %p208 = scmp.ne.s32.totalorder %s194, %s195
      %p209 = scmp.eq.s32.totalorder %s21, 1
      %p210 = por %p208, %p209
      %p212 = scmp.ne.s32.totalorder %s195, %s211
      %p213 = scmp.eq.s32.totalorder %s21, 0
      %p214 = por %p212, %p213
      %p215 = scmp.le.s32.totalorder 1, %s15
      %p216 = scmp.lt.s32.totalorder %s15, 3
      %p217 = pnand %p215, %p216
      %p218 = pneg %p217
      // Predicated region
      $region9: #{genshin_forward.1} parent=5 // pred_check
        _
      $region10: #{genshin_forward.1} parent=5 // pred_check_branch
        %220 = sbr.rel (%p217) target = $region12
      $region11: #{genshin_forward.1} parent=5 // pred_region
        %s221 = ssub.s32 %s15, 1
        // Predicated region
        $region13: #{genshin_forward.1} parent=11 // pred_check
          %p222 = pneg %p48
        $region14: #{genshin_forward.1} parent=11 // pred_check_branch
          %224 = sbr.rel (%p222) target = $region16
        $region15: #{genshin_forward.1} parent=11 // pred_region
          %s226 = ssub.s32 64, 64
          %227 = vsyncadd [#allocation3], %s226
          %s229 = sshll.u32 %s0, 4
          %s230 = int_to_ptr.vmem [resolvable:$true] %s229
          %232 = dma.vmem_to_smem %s230, 64, [#allocation2], [#allocation3]
        $region16: #{genshin_forward.1} parent=11 // pred_fallthru
          _
        // Predicated region
        $region17: #{genshin_forward.1} parent=11 // pred_check
          %p233 = pneg %p69
        $region18: #{genshin_forward.1} parent=11 // pred_check_branch
          %235 = sbr.rel (%p233) target = $region20
        $region19: #{genshin_forward.1} parent=11 // pred_region
          %s237 = ssub.s32 64, 64
          %238 = vsyncadd [#allocation5], %s237
          %s240 = sshll.u32 %s1, 4
          %s241 = int_to_ptr.vmem [resolvable:$true] %s240
          %243 = dma.vmem_to_smem %s241, 64, [#allocation4], [#allocation5]
        $region20: #{genshin_forward.1} parent=11 // pred_fallthru
          _
      $region12: #{genshin_forward.1} parent=5 // pred_fallthru
        _
      %p244 = scmp.lt.s32.totalorder %s15, 2
      // Predicated region
      $region21: #{genshin_forward.1} parent=5 // pred_check
        %p245 = pneg %p244
      $region22: #{genshin_forward.1} parent=5 // pred_check_branch
        %247 = sbr.rel (%p245) target = $region24
      $region23: #{genshin_forward.1} parent=5 // pred_region
        // Predicated region
        $region25: #{genshin_forward.1} parent=23 // pred_check
          %p248 = pneg %p91
        $region26: #{genshin_forward.1} parent=23 // pred_check_branch
          %250 = sbr.rel (%p248) target = $region28
        $region27: #{genshin_forward.1} parent=23 // pred_region
          %s251 = sand.u32 %s81, 1
          %s252 = sand.u32 %s81, 1
          %s253 = smul.addr %s252, 24
          %s254 = scalar_lea.vmem [#allocation6], %s253
          %s255 = sadd.s32 %s22, %s23
          %s256 = smul.addr %s255, 8
          %s257 = scalar_lea.vmem %s2, %s256
          // Predicated region
          $region29: #{genshin_forward.1} parent=27 // pred_check
            _
          $region30: #{genshin_forward.1} parent=27 // pred_check_branch
            %259 = sbr.rel (0) target = $region32
          $region31: #{genshin_forward.1} parent=27 // pred_region
            // Predicated region
            $region33: #{genshin_forward.1} parent=31 // pred_check
              _
            $region34: #{genshin_forward.1} parent=31 // pred_check_branch
              %261 = sbr.rel (0) target = $region36
            $region35: #{genshin_forward.1} parent=31 // pred_region
              // Predicated region
              $region48: #{genshin_forward.1} parent=35 // pred_check
                _
              $region49: #{genshin_forward.1} parent=35 // pred_check_branch
                %281 = sbr.rel (0) target = $region51
              $region50: #{genshin_forward.1} parent=35 // pred_region
                loop: start=0, step=1, limit=1
                $region52: #{genshin_forward.1} parent=50 // loop_pre_header
                  _
                $region53: #{genshin_forward.1} parent=50 // loop_header
                  %s283 = sphi 0, %s287
                  %p284 = scmp.ge.s32.totalorder %s283, 1
                  %s288 = sphi %s257, %s257
                  %s289 = sphi %s254, %s254
                $region54: #{genshin_forward.1} parent=50 // loop_header_branch
                  %286 = sbr.rel (%p284) target = $region58
                $region55: #{genshin_forward.1} parent=50 // loop_body
                  %v290 = vld [vmem:[%s288] sm:$0xff]
                  %291 = vst [vmem:[%s289] sm:$0xff] %v290
                  %v292 = vld [vmem:[%s288 + $0x10] sm:$0xff]
                  %293 = vst [vmem:[%s289 + $0x8] sm:$0xff] %v292
                  %v294 = vld [vmem:[%s288 + $0x20] sm:$0xff]
                  %295 = vst [vmem:[%s289 + $0x10] sm:$0xff] %v294
                $region56: #{genshin_forward.1} parent=50 // loop_footer
                  %s287 = sadd.s32 1, %s283
                $region57: #{genshin_forward.1} parent=50 // loop_footer_branch
                  %282 = sbr.rel target = $region53
                $region58: #{genshin_forward.1} parent=50 // loop_exit
                  _
              $region51: #{genshin_forward.1} parent=35 // pred_fallthru
                _
              // Predicated region
              $region59: #{genshin_forward.1} parent=35 // pred_check
                _
              $region60: #{genshin_forward.1} parent=35 // pred_check_branch
                %297 = sbr.rel target = $region62
              $region61: #{genshin_forward.1} parent=35 // pred_region
                _
              $region62: #{genshin_forward.1} parent=35 // pred_fallthru
                _
            $region36: #{genshin_forward.1} parent=31 // pred_fallthru
              _
            // Predicated region
            $region37: #{genshin_forward.1} parent=31 // pred_check
              _
            $region38: #{genshin_forward.1} parent=31 // pred_check_branch
              %263 = sbr.rel target = $region40
            $region39: #{genshin_forward.1} parent=31 // pred_region
              %s265 = ssub.s32 256, 1
              loop: start=0, step=1, limit=1
              $region41: #{genshin_forward.1} parent=39 // loop_pre_header
                _
              $region42: #{genshin_forward.1} parent=39 // loop_header
                %s267 = sphi 0, %s271
                %p268 = scmp.ge.s32.totalorder %s267, 1
                %s272 = sphi %s257, %s257
                %s273 = sphi %s254, %s254
              $region43: #{genshin_forward.1} parent=39 // loop_header_branch
                %270 = sbr.rel (%p268) target = $region47
              $region44: #{genshin_forward.1} parent=39 // loop_body
                %v274 = vld [vmem:[%s272] sm:%s265]
                %275 = vst [vmem:[%s273] sm:%s265] %v274
                %v276 = vld [vmem:[%s272 + $0x10] sm:%s265]
                %277 = vst [vmem:[%s273 + $0x8] sm:%s265] %v276
                %v278 = vld [vmem:[%s272 + $0x20] sm:%s265]
                %279 = vst [vmem:[%s273 + $0x10] sm:%s265] %v278
              $region45: #{genshin_forward.1} parent=39 // loop_footer
                %s271 = sadd.s32 1, %s267
              $region46: #{genshin_forward.1} parent=39 // loop_footer_branch
                %266 = sbr.rel target = $region42
              $region47: #{genshin_forward.1} parent=39 // loop_exit
                _
            $region40: #{genshin_forward.1} parent=31 // pred_fallthru
              _
          $region32: #{genshin_forward.1} parent=27 // pred_fallthru
            _
          %298 = vnop
        $region28: #{genshin_forward.1} parent=23 // pred_fallthru
          _
        // Predicated region
        $region63: #{genshin_forward.1} parent=23 // pred_check
          %p299 = pneg %p119
        $region64: #{genshin_forward.1} parent=23 // pred_check_branch
          %301 = sbr.rel (%p299) target = $region66
        $region65: #{genshin_forward.1} parent=23 // pred_region
          %s302 = sand.u32 %s109, 1
          %s303 = sand.u32 %s109, 1
          %s304 = smul.addr %s303, 24
          %s305 = scalar_lea.vmem [#allocation7], %s304
          %s306 = sadd.s32 %s22, %s23
          %s307 = smul.addr %s306, 8
          %s308 = scalar_lea.vmem %s3, %s307
          // Predicated region
          $region67: #{genshin_forward.1} parent=65 // pred_check
            _
          $region68: #{genshin_forward.1} parent=65 // pred_check_branch
            %310 = sbr.rel (0) target = $region70
          $region69: #{genshin_forward.1} parent=65 // pred_region
            // Predicated region
            $region71: #{genshin_forward.1} parent=69 // pred_check
              _
            $region72: #{genshin_forward.1} parent=69 // pred_check_branch
              %312 = sbr.rel (0) target = $region74
            $region73: #{genshin_forward.1} parent=69 // pred_region
              // Predicated region
              $region86: #{genshin_forward.1} parent=73 // pred_check
                _
              $region87: #{genshin_forward.1} parent=73 // pred_check_branch
                %332 = sbr.rel (0) target = $region89
              $region88: #{genshin_forward.1} parent=73 // pred_region
                loop: start=0, step=1, limit=1
                $region90: #{genshin_forward.1} parent=88 // loop_pre_header
                  _
                $region91: #{genshin_forward.1} parent=88 // loop_header
                  %s334 = sphi 0, %s338
                  %p335 = scmp.ge.s32.totalorder %s334, 1
                  %s339 = sphi %s308, %s308
                  %s340 = sphi %s305, %s305
                $region92: #{genshin_forward.1} parent=88 // loop_header_branch
                  %337 = sbr.rel (%p335) target = $region96
                $region93: #{genshin_forward.1} parent=88 // loop_body
                  %v341 = vld [vmem:[%s339] sm:$0xff]
                  %342 = vst [vmem:[%s340] sm:$0xff] %v341
                  %v343 = vld [vmem:[%s339 + $0x10] sm:$0xff]
                  %344 = vst [vmem:[%s340 + $0x8] sm:$0xff] %v343
                  %v345 = vld [vmem:[%s339 + $0x20] sm:$0xff]
                  %346 = vst [vmem:[%s340 + $0x10] sm:$0xff] %v345
                $region94: #{genshin_forward.1} parent=88 // loop_footer
                  %s338 = sadd.s32 1, %s334
                $region95: #{genshin_forward.1} parent=88 // loop_footer_branch
                  %333 = sbr.rel target = $region91
                $region96: #{genshin_forward.1} parent=88 // loop_exit
                  _
              $region89: #{genshin_forward.1} parent=73 // pred_fallthru
                _
              // Predicated region
              $region97: #{genshin_forward.1} parent=73 // pred_check
                _
              $region98: #{genshin_forward.1} parent=73 // pred_check_branch
                %348 = sbr.rel target = $region100
              $region99: #{genshin_forward.1} parent=73 // pred_region
                _
              $region100: #{genshin_forward.1} parent=73 // pred_fallthru
                _
            $region74: #{genshin_forward.1} parent=69 // pred_fallthru
              _
            // Predicated region
            $region75: #{genshin_forward.1} parent=69 // pred_check
              _
            $region76: #{genshin_forward.1} parent=69 // pred_check_branch
              %314 = sbr.rel target = $region78
            $region77: #{genshin_forward.1} parent=69 // pred_region
              %s316 = ssub.s32 256, 1
              loop: start=0, step=1, limit=1
              $region79: #{genshin_forward.1} parent=77 // loop_pre_header
                _
              $region80: #{genshin_forward.1} parent=77 // loop_header
                %s318 = sphi 0, %s322
                %p319 = scmp.ge.s32.totalorder %s318, 1
                %s323 = sphi %s308, %s308
                %s324 = sphi %s305, %s305
              $region81: #{genshin_forward.1} parent=77 // loop_header_branch
                %321 = sbr.rel (%p319) target = $region85
              $region82: #{genshin_forward.1} parent=77 // loop_body
                %v325 = vld [vmem:[%s323] sm:%s316]
                %326 = vst [vmem:[%s324] sm:%s316] %v325
                %v327 = vld [vmem:[%s323 + $0x10] sm:%s316]
                %328 = vst [vmem:[%s324 + $0x8] sm:%s316] %v327
                %v329 = vld [vmem:[%s323 + $0x20] sm:%s316]
                %330 = vst [vmem:[%s324 + $0x10] sm:%s316] %v329
              $region83: #{genshin_forward.1} parent=77 // loop_footer
                %s322 = sadd.s32 1, %s318
              $region84: #{genshin_forward.1} parent=77 // loop_footer_branch
                %317 = sbr.rel target = $region80
              $region85: #{genshin_forward.1} parent=77 // loop_exit
                _
            $region78: #{genshin_forward.1} parent=69 // pred_fallthru
              _
          $region70: #{genshin_forward.1} parent=65 // pred_fallthru
            _
          %349 = vnop
        $region66: #{genshin_forward.1} parent=23 // pred_fallthru
          _
        // Predicated region
        $region101: #{genshin_forward.1} parent=23 // pred_check
          %p350 = pneg %p147
        $region102: #{genshin_forward.1} parent=23 // pred_check_branch
          %352 = sbr.rel (%p350) target = $region104
        $region103: #{genshin_forward.1} parent=23 // pred_region
          %s353 = sand.u32 %s137, 1
          %s354 = sand.u32 %s137, 1
          %s355 = smul.addr %s354, 24
          %s356 = scalar_lea.vmem [#allocation8], %s355
          %s357 = sadd.s32 %s22, %s23
          %s358 = smul.addr %s357, 8
          %s359 = scalar_lea.vmem %s4, %s358
          // Predicated region
          $region105: #{genshin_forward.1} parent=103 // pred_check
            _
          $region106: #{genshin_forward.1} parent=103 // pred_check_branch
            %361 = sbr.rel (0) target = $region108
          $region107: #{genshin_forward.1} parent=103 // pred_region
            // Predicated region
            $region109: #{genshin_forward.1} parent=107 // pred_check
              _
            $region110: #{genshin_forward.1} parent=107 // pred_check_branch
              %363 = sbr.rel (0) target = $region112
            $region111: #{genshin_forward.1} parent=107 // pred_region
              // Predicated region
              $region124: #{genshin_forward.1} parent=111 // pred_check
                _
              $region125: #{genshin_forward.1} parent=111 // pred_check_branch
                %383 = sbr.rel (0) target = $region127
              $region126: #{genshin_forward.1} parent=111 // pred_region
                loop: start=0, step=1, limit=1
                $region128: #{genshin_forward.1} parent=126 // loop_pre_header
                  _
                $region129: #{genshin_forward.1} parent=126 // loop_header
                  %s385 = sphi 0, %s389
                  %p386 = scmp.ge.s32.totalorder %s385, 1
                  %s390 = sphi %s359, %s359
                  %s391 = sphi %s356, %s356
                $region130: #{genshin_forward.1} parent=126 // loop_header_branch
                  %388 = sbr.rel (%p386) target = $region134
                $region131: #{genshin_forward.1} parent=126 // loop_body
                  %v392 = vld [vmem:[%s390] sm:$0xff]
                  %393 = vst [vmem:[%s391] sm:$0xff] %v392
                  %v394 = vld [vmem:[%s390 + $0x10] sm:$0xff]
                  %395 = vst [vmem:[%s391 + $0x8] sm:$0xff] %v394
                  %v396 = vld [vmem:[%s390 + $0x20] sm:$0xff]
                  %397 = vst [vmem:[%s391 + $0x10] sm:$0xff] %v396
                $region132: #{genshin_forward.1} parent=126 // loop_footer
                  %s389 = sadd.s32 1, %s385
                $region133: #{genshin_forward.1} parent=126 // loop_footer_branch
                  %384 = sbr.rel target = $region129
                $region134: #{genshin_forward.1} parent=126 // loop_exit
                  _
              $region127: #{genshin_forward.1} parent=111 // pred_fallthru
                _
              // Predicated region
              $region135: #{genshin_forward.1} parent=111 // pred_check
                _
              $region136: #{genshin_forward.1} parent=111 // pred_check_branch
                %399 = sbr.rel target = $region138
              $region137: #{genshin_forward.1} parent=111 // pred_region
                _
              $region138: #{genshin_forward.1} parent=111 // pred_fallthru
                _
            $region112: #{genshin_forward.1} parent=107 // pred_fallthru
              _
            // Predicated region
            $region113: #{genshin_forward.1} parent=107 // pred_check
              _
            $region114: #{genshin_forward.1} parent=107 // pred_check_branch
              %365 = sbr.rel target = $region116
            $region115: #{genshin_forward.1} parent=107 // pred_region
              %s367 = ssub.s32 256, 1
              loop: start=0, step=1, limit=1
              $region117: #{genshin_forward.1} parent=115 // loop_pre_header
                _
              $region118: #{genshin_forward.1} parent=115 // loop_header
                %s369 = sphi 0, %s373
                %p370 = scmp.ge.s32.totalorder %s369, 1
                %s374 = sphi %s359, %s359
                %s375 = sphi %s356, %s356
              $region119: #{genshin_forward.1} parent=115 // loop_header_branch
                %372 = sbr.rel (%p370) target = $region123
              $region120: #{genshin_forward.1} parent=115 // loop_body
                %v376 = vld [vmem:[%s374] sm:%s367]
                %377 = vst [vmem:[%s375] sm:%s367] %v376
                %v378 = vld [vmem:[%s374 + $0x10] sm:%s367]
                %379 = vst [vmem:[%s375 + $0x8] sm:%s367] %v378
                %v380 = vld [vmem:[%s374 + $0x20] sm:%s367]
                %381 = vst [vmem:[%s375 + $0x10] sm:%s367] %v380
              $region121: #{genshin_forward.1} parent=115 // loop_footer
                %s373 = sadd.s32 1, %s369
              $region122: #{genshin_forward.1} parent=115 // loop_footer_branch
                %368 = sbr.rel target = $region118
              $region123: #{genshin_forward.1} parent=115 // loop_exit
                _
            $region116: #{genshin_forward.1} parent=107 // pred_fallthru
              _
          $region108: #{genshin_forward.1} parent=103 // pred_fallthru
            _
          %400 = vnop
        $region104: #{genshin_forward.1} parent=23 // pred_fallthru
          _
      $region24: #{genshin_forward.1} parent=5 // pred_fallthru
        _
      %p401 = scmp.le.s32.totalorder 1, %s15
      %p402 = scmp.lt.s32.totalorder %s15, 3
      %p403 = pnand %p401, %p402
      %p404 = pneg %p403
      // Predicated region
      $region139: #{genshin_forward.1} parent=5 // pred_check
        _
      $region140: #{genshin_forward.1} parent=5 // pred_check_branch
        %406 = sbr.rel (%p403) target = $region142
      $region141: #{genshin_forward.1} parent=5 // pred_region
        %s407 = ssub.s32 %s15, 1
        // Predicated region
        $region143: #{genshin_forward.1} parent=141 // pred_check
          %p408 = pneg %p48
        $region144: #{genshin_forward.1} parent=141 // pred_check_branch
          %410 = sbr.rel (%p408) target = $region146
        $region145: #{genshin_forward.1} parent=141 // pred_region
          %411 = dma.done [#allocation3], 64
        $region146: #{genshin_forward.1} parent=141 // pred_fallthru
          _
        // Predicated region
        $region147: #{genshin_forward.1} parent=141 // pred_check
          %p412 = pneg %p69
        $region148: #{genshin_forward.1} parent=141 // pred_check_branch
          %414 = sbr.rel (%p412) target = $region150
        $region149: #{genshin_forward.1} parent=141 // pred_region
          %415 = dma.done [#allocation5], 64
        $region150: #{genshin_forward.1} parent=141 // pred_fallthru
          _
        %s416 = sand.u32 %s84, 1
        %s417 = sand.u32 %s84, 1
        %s418 = smul.addr %s417, 24
        %s419 = scalar_lea.vmem [#allocation6], %s418
        // Predicated region
        $region151: #{genshin_forward.1} parent=141 // pred_check
          %p420 = pneg %p97
        $region152: #{genshin_forward.1} parent=141 // pred_check_branch
          %422 = sbr.rel (%p420) target = $region154
        $region153: #{genshin_forward.1} parent=141 // pred_region
          _
        $region154: #{genshin_forward.1} parent=141 // pred_fallthru
          _
        %s423 = sand.u32 %s112, 1
        %s424 = sand.u32 %s112, 1
        %s425 = smul.addr %s424, 24
        %s426 = scalar_lea.vmem [#allocation7], %s425
        // Predicated region
        $region155: #{genshin_forward.1} parent=141 // pred_check
          %p427 = pneg %p125
        $region156: #{genshin_forward.1} parent=141 // pred_check_branch
          %429 = sbr.rel (%p427) target = $region158
        $region157: #{genshin_forward.1} parent=141 // pred_region
          _
        $region158: #{genshin_forward.1} parent=141 // pred_fallthru
          _
        %s430 = sand.u32 %s140, 1
        %s431 = sand.u32 %s140, 1
        %s432 = smul.addr %s431, 24
        %s433 = scalar_lea.vmem [#allocation8], %s432
        // Predicated region
        $region159: #{genshin_forward.1} parent=141 // pred_check
          %p434 = pneg %p153
        $region160: #{genshin_forward.1} parent=141 // pred_check_branch
          %436 = sbr.rel (%p434) target = $region162
        $region161: #{genshin_forward.1} parent=141 // pred_region
          _
        $region162: #{genshin_forward.1} parent=141 // pred_fallthru
          _
        %437 = sfence
        %p438 = pneg %p48
        %p439 = pneg %p45
        %p440 = pneg %p69
        %p441 = pneg %p66
        %s442 = sand.u32 %s84, 1
        %s443 = sand.u32 %s84, 1
        %s444 = smul.addr %s443, 24
        %s445 = scalar_lea.vmem [#allocation6], %s444
        %p446 = pneg %p97
        %p447 = pneg %p94
        %s448 = sand.u32 %s112, 1
        %s449 = sand.u32 %s112, 1
        %s450 = smul.addr %s449, 24
        %s451 = scalar_lea.vmem [#allocation7], %s450
        %p452 = pneg %p125
        %p453 = pneg %p122
        %s454 = sand.u32 %s140, 1
        %s455 = sand.u32 %s140, 1
        %s456 = smul.addr %s455, 24
        %s457 = scalar_lea.vmem [#allocation8], %s456
        %p458 = pneg %p153
        %p459 = pneg %p150
        %p460 = pneg %p181
        %p461 = pneg %p178
        %s462 = sand.u32 %s168, 1
        %s463 = sand.u32 %s168, 1
        %s464 = smul.addr %s463, 24
        %s465 = scalar_lea.vmem [#allocation9], %s464
        %p466 = pneg %p207
        %p467 = pneg %p204
        %p468 = scmp.lt.s32.totalorder %s24, 1
        %s469 = scalar_select %p468, %s24, 1
        %s470 = smul.addr %s469, 8
        %s471 = scalar_lea.vmem %s6, %s470
        %s472 = sadd.s32 %s24, %s25
        %s473 = sadd.s32 %s24, %s25
        %s474 = sadd.s32 %s24, %s25
        %s475 = sadd.s32 %s24, %s25
        %p476 = scmp.lt.s32.totalorder %s24, 1
        %s477 = scalar_select %p476, %s24, 1
        %s478 = smul.addr %s477, 8
        %s479 = scalar_lea.vmem %s6, %s478
        %p480 = scmp.eq.s32.totalorder %s25, 0
        // Predicated region
        $region163: #{genshin_forward.1} parent=141 // pred_check
          %p481 = pneg %p480
        $region164: #{genshin_forward.1} parent=141 // pred_check_branch
          %483 = sbr.rel (%p481) target = $region166
        $region165: #{genshin_forward.1} parent=141 // pred_region
          %484 = vst [vmem:[%s479] sm:$0xff] 0.0
        $region166: #{genshin_forward.1} parent=141 // pred_fallthru
          _
        %v485 = vld [vmem:[%s419] sm:$0xff]
        %s486 = scalar_lea.vmem %s419, 8 [#allocation6]
        %v487 = vld [vmem:[%s486] sm:$0xff]
        %s488 = scalar_lea.vmem %s419, 16 [#allocation6]
        %v489 = vld [vmem:[%s488] sm:$0xff]
        %s490 = sld [smem:[#allocation2]]
        %v491 = vstv %s490
        %v492 = vmul.f32 %v491, %v485
        %s493 = sld [smem:[#allocation2 + $0x1]]
        %v494 = vstv %s493
        %v495 = vmul.f32 %v494, %v487
        %v496 = vadd.f32 %v492, %v495
        %s497 = sld [smem:[#allocation2 + $0x2]]
        %v498 = vstv %s497
        %v499 = vmul.f32 %v498, %v489
        %v500 = vadd.f32 %v496, %v499
        %s501 = sld [smem:[#allocation2 + $0x80]]
        %v502 = vstv %s501
        %v503 = vmul.f32 %v502, %v485
        %s504 = sld [smem:[#allocation2 + $0x81]]
        %v505 = vstv %s504
        %v506 = vmul.f32 %v505, %v487
        %v507 = vadd.f32 %v503, %v506
        %s508 = sld [smem:[#allocation2 + $0x82]]
        %v509 = vstv %s508
        %v510 = vmul.f32 %v509, %v489
        %v511 = vadd.f32 %v507, %v510
        %s512 = sld [smem:[#allocation2 + $0x100]]
        %v513 = vstv %s512
        %v514 = vmul.f32 %v513, %v485
        %s515 = sld [smem:[#allocation2 + $0x101]]
        %v516 = vstv %s515
        %v517 = vmul.f32 %v516, %v487
        %v518 = vadd.f32 %v514, %v517
        %s519 = sld [smem:[#allocation2 + $0x102]]
        %v520 = vstv %s519
        %v521 = vmul.f32 %v520, %v489
        %v522 = vadd.f32 %v518, %v521
        %v523 = vmul.f32 %v500, %v500
        %v524 = vmul.f32 %v511, %v511
        %v525 = vadd.f32 %v523, %v524
        %v526 = vmul.f32 %v522, %v522
        %v527 = vadd.f32 %v525, %v526
        %v528 = vmax.f32 %v527, 1e-20
        %v529 = vrsqrt.pop %v528
        %v530 = vmul.f32 %v500, %v529
        %v531 = vmul.f32 %v511, %v529
        %v532 = vmul.f32 %v522, %v529
        %s533 = sld [smem:[#allocation4]]
        %v534 = vstv %s533
        %v535 = vmul.f32 %v534, %v530
        %s536 = sld [smem:[#allocation4 + $0x1]]
        %v537 = vstv %s536
        %v538 = vmul.f32 %v537, %v531
        %v539 = vadd.f32 %v535, %v538
        %s540 = sld [smem:[#allocation4 + $0x2]]
        %v541 = vstv %s540
        %v542 = vmul.f32 %v541, %v532
        %v543 = vadd.f32 %v539, %v542
        %544 = vst [vmem:[%s465] sm:$0xff] %v543
        %s545 = sld [smem:[#allocation4 + $0x80]]
        %v546 = vstv %s545
        %v547 = vmul.f32 %v546, %v530
        %s548 = sld [smem:[#allocation4 + $0x81]]
        %v549 = vstv %s548
        %v550 = vmul.f32 %v549, %v531
        %v551 = vadd.f32 %v547, %v550
        %s552 = sld [smem:[#allocation4 + $0x82]]
        %v553 = vstv %s552
        %v554 = vmul.f32 %v553, %v532
        %v555 = vadd.f32 %v551, %v554
        %s556 = scalar_lea.vmem %s465, 8 [#allocation9]
        %557 = vst [vmem:[%s556] sm:$0xff] %v555
        %s558 = sld [smem:[#allocation4 + $0x100]]
        %v559 = vstv %s558
        %v560 = vmul.f32 %v559, %v530
        %s561 = sld [smem:[#allocation4 + $0x101]]
        %v562 = vstv %s561
        %v563 = vmul.f32 %v562, %v531
        %v564 = vadd.f32 %v560, %v563
        %s565 = sld [smem:[#allocation4 + $0x102]]
        %v566 = vstv %s565
        %v567 = vmul.f32 %v566, %v532
        %v568 = vadd.f32 %v564, %v567
        %s569 = scalar_lea.vmem %s465, 16 [#allocation9]
        %570 = vst [vmem:[%s569] sm:$0xff] %v568
        %v571 = vld [vmem:[%s433] sm:$0xff]
        %v572 = vld [vmem:[%s433 + $0x8] sm:$0xff]
        %v573 = vld [vmem:[%s433 + $0x10] sm:$0xff]
        %v574 = vld [vmem:[%s426] sm:$0xff]
        %v575 = vld [vmem:[%s426 + $0x8] sm:$0xff]
        %v576 = vld [vmem:[%s426 + $0x10] sm:$0xff]
        %v577 = vsub.f32 %v571, %v574
        %v578 = vsub.f32 %v572, %v575
        %v579 = vsub.f32 %v573, %v576
        %v580 = vand.u32 2147483647, %v577
        %v581 = vand.u32 2147483647, %v578
        %v582 = vand.u32 2147483647, %v579
        %v583 = vadd.f32 %v580, %v581
        %v584 = vadd.f32 %v583, %v582
        %v585 = vld [vmem:[%s479] sm:$0xff]
        %v586 = vadd.f32 %v585, %v584
        %587 = vst [vmem:[%s479] sm:$0xff] %v586
        %s588 = sand.u32 %s168, 1
        %s589 = sand.u32 %s168, 1
        %s590 = smul.addr %s589, 24
        %s591 = scalar_lea.vmem [#allocation9], %s590
        %p592 = scmp.lt.s32.totalorder %s24, 1
        %s593 = scalar_select %p592, %s24, 1
        %s594 = smul.addr %s593, 8
        %s595 = scalar_lea.vmem %s6, %s594
        // Predicated region
        $region167: #{genshin_forward.1} parent=141 // pred_check
          %p596 = pneg %p178
        $region168: #{genshin_forward.1} parent=141 // pred_check_branch
          %598 = sbr.rel (%p596) target = $region170
        $region169: #{genshin_forward.1} parent=141 // pred_region
          %s599 = sadd.s32 %s24, %s25
          %s600 = smul.addr %s599, 8
          %s601 = scalar_lea.vmem %s5, %s600
          // Predicated region
          $region171: #{genshin_forward.1} parent=169 // pred_check
            _
          $region172: #{genshin_forward.1} parent=169 // pred_check_branch
            %603 = sbr.rel (0) target = $region174
          $region173: #{genshin_forward.1} parent=169 // pred_region
            // Predicated region
            $region175: #{genshin_forward.1} parent=173 // pred_check
              _
            $region176: #{genshin_forward.1} parent=173 // pred_check_branch
              %605 = sbr.rel (0) target = $region178
            $region177: #{genshin_forward.1} parent=173 // pred_region
              // Predicated region
              $region190: #{genshin_forward.1} parent=177 // pred_check
                _
              $region191: #{genshin_forward.1} parent=177 // pred_check_branch
                %625 = sbr.rel (0) target = $region193
              $region192: #{genshin_forward.1} parent=177 // pred_region
                loop: start=0, step=1, limit=1
                $region194: #{genshin_forward.1} parent=192 // loop_pre_header
                  _
                $region195: #{genshin_forward.1} parent=192 // loop_header
                  %s627 = sphi 0, %s631
                  %p628 = scmp.ge.s32.totalorder %s627, 1
                  %s632 = sphi %s591, %s591
                  %s633 = sphi %s601, %s601
                $region196: #{genshin_forward.1} parent=192 // loop_header_branch
                  %630 = sbr.rel (%p628) target = $region200
                $region197: #{genshin_forward.1} parent=192 // loop_body
                  %v634 = vld [vmem:[%s632] sm:$0xff]
                  %635 = vst [vmem:[%s633] sm:$0xff] %v634
                  %v636 = vld [vmem:[%s632 + $0x8] sm:$0xff]
                  %637 = vst [vmem:[%s633 + $0x10] sm:$0xff] %v636
                  %v638 = vld [vmem:[%s632 + $0x10] sm:$0xff]
                  %639 = vst [vmem:[%s633 + $0x20] sm:$0xff] %v638
                $region198: #{genshin_forward.1} parent=192 // loop_footer
                  %s631 = sadd.s32 1, %s627
                $region199: #{genshin_forward.1} parent=192 // loop_footer_branch
                  %626 = sbr.rel target = $region195
                $region200: #{genshin_forward.1} parent=192 // loop_exit
                  _
              $region193: #{genshin_forward.1} parent=177 // pred_fallthru
                _
              // Predicated region
              $region201: #{genshin_forward.1} parent=177 // pred_check
                _
              $region202: #{genshin_forward.1} parent=177 // pred_check_branch
                %641 = sbr.rel target = $region204
              $region203: #{genshin_forward.1} parent=177 // pred_region
                _
              $region204: #{genshin_forward.1} parent=177 // pred_fallthru
                _
            $region178: #{genshin_forward.1} parent=173 // pred_fallthru
              _
            // Predicated region
            $region179: #{genshin_forward.1} parent=173 // pred_check
              _
            $region180: #{genshin_forward.1} parent=173 // pred_check_branch
              %607 = sbr.rel target = $region182
            $region181: #{genshin_forward.1} parent=173 // pred_region
              %s609 = ssub.s32 256, 1
              loop: start=0, step=1, limit=1
              $region183: #{genshin_forward.1} parent=181 // loop_pre_header
                _
              $region184: #{genshin_forward.1} parent=181 // loop_header
                %s611 = sphi 0, %s615
                %p612 = scmp.ge.s32.totalorder %s611, 1
                %s616 = sphi %s591, %s591
                %s617 = sphi %s601, %s601
              $region185: #{genshin_forward.1} parent=181 // loop_header_branch
                %614 = sbr.rel (%p612) target = $region189
              $region186: #{genshin_forward.1} parent=181 // loop_body
                %v618 = vld [vmem:[%s616] sm:%s609]
                %619 = vst [vmem:[%s617] sm:%s609] %v618
                %v620 = vld [vmem:[%s616 + $0x8] sm:%s609]
                %621 = vst [vmem:[%s617 + $0x10] sm:%s609] %v620
                %v622 = vld [vmem:[%s616 + $0x10] sm:%s609]
                %623 = vst [vmem:[%s617 + $0x20] sm:%s609] %v622
              $region187: #{genshin_forward.1} parent=181 // loop_footer
                %s615 = sadd.s32 1, %s611
              $region188: #{genshin_forward.1} parent=181 // loop_footer_branch
                %610 = sbr.rel target = $region184
              $region189: #{genshin_forward.1} parent=181 // loop_exit
                _
            $region182: #{genshin_forward.1} parent=173 // pred_fallthru
              _
          $region174: #{genshin_forward.1} parent=169 // pred_fallthru
            _
          %642 = vnop
        $region170: #{genshin_forward.1} parent=141 // pred_fallthru
          _
        // Predicated region
        $region205: #{genshin_forward.1} parent=141 // pred_check
          %p643 = pneg %p204
        $region206: #{genshin_forward.1} parent=141 // pred_check_branch
          %645 = sbr.rel (%p643) target = $region208
        $region207: #{genshin_forward.1} parent=141 // pred_region
          _
        $region208: #{genshin_forward.1} parent=141 // pred_fallthru
          _
      $region142: #{genshin_forward.1} parent=5 // pred_fallthru
        _
      %p646 = scmp.le.s32.totalorder 2, %s15
      // Predicated region
      $region209: #{genshin_forward.1} parent=5 // pred_check
        %p647 = pneg %p646
      $region210: #{genshin_forward.1} parent=5 // pred_check_branch
        %649 = sbr.rel (%p647) target = $region212
      $region211: #{genshin_forward.1} parent=5 // pred_region
        %s650 = ssub.s32 %s15, 2
        // Predicated region
        $region213: #{genshin_forward.1} parent=211 // pred_check
          %p651 = pneg %p184
        $region214: #{genshin_forward.1} parent=211 // pred_check_branch
          %653 = sbr.rel (%p651) target = $region216
        $region215: #{genshin_forward.1} parent=211 // pred_region
          %s654 = sand.u32 %s169, 1
          %s655 = sand.u32 %s169, 1
          %s656 = smul.addr %s655, 24
          %s657 = scalar_lea.vmem [#allocation9], %s656
        $region216: #{genshin_forward.1} parent=211 // pred_fallthru
          _
        // Predicated region
        $region217: #{genshin_forward.1} parent=211 // pred_check
          %p658 = pneg %p210
        $region218: #{genshin_forward.1} parent=211 // pred_check_branch
          %660 = sbr.rel (%p658) target = $region220
        $region219: #{genshin_forward.1} parent=211 // pred_region
          %p661 = scmp.lt.s32.totalorder %s26, 1
          %s662 = scalar_select %p661, %s26, 1
          %s663 = smul.addr %s662, 8
          %s664 = scalar_lea.vmem %s6, %s663
        $region220: #{genshin_forward.1} parent=211 // pred_fallthru
          _
      $region212: #{genshin_forward.1} parent=5 // pred_fallthru
        _
    $region6: #{genshin_forward.1} parent=1 // loop_footer
      %s19 = sadd.s32 1, %s15
    $region7: #{genshin_forward.1} parent=1 // loop_footer_branch
      %14 = sbr.rel target = $region3
    $region8: #{genshin_forward.1} parent=1 // loop_exit
      _
    %665 = vsyncpa [#allocation3], 1
    %s666 = scalar_lea.sflag [#allocation3], 1
    %667 = vsyncpa %s666, 1
    %668 = vsyncpa [#allocation5], 1

</llo_original>
